<compile_context>
chip_gen: v6e
topology: v6e:2x2x1
jax: 0.10.0
libtpu: 0.0.40
codegen_flags: <defaults>
</compile_context>

<pallas_src>
import math

import jax
import jax.numpy as jnp
from jax.experimental import pallas as pl
from jax.experimental.pallas import tpu as pltpu


# ---------------------------------------------------------------------------
# Kernels
# ---------------------------------------------------------------------------
def _make_fused_kernel(k, c, inv_n):
    """Single pass: f32 row-sum -> gate MLP (VPU/EUP) -> per-channel scale."""

    def kernel(x_ref, w1_ref, w2t_ref, o_ref):
        # f32 column sums over the (folded) row axis.
        colsum = jnp.sum(x_ref[...].astype(jnp.float32), axis=0,
                         keepdims=True)                         # (1, k*C)
        # Fold the k lane groups back into per-channel sums.
        ch = colsum[:, 0:c]
        for g in range(1, k):
            ch = ch + colsum[:, g * c:(g + 1) * c]
        y = ch * inv_n                                          # (1, C)
        # Tiny gate MLP as broadcast-multiply + reduce (H is tiny: avoid MXU).
        h = jnp.sum(y * w1_ref[...], axis=1, keepdims=True)     # (H, 1)
        h = jnp.maximum(h, 0.0)
        s = jnp.sum(h * w2t_ref[...], axis=0, keepdims=True)    # (1, C)
        s = jax.nn.sigmoid(s)                                   # EUP
        if k > 1:
            s = jnp.concatenate([s] * k, axis=-1)               # (1, k*C)
        o_ref[...] = (x_ref[...] * s.astype(o_ref.dtype)).astype(o_ref.dtype)

    return kernel


def _make_rowsum_kernel(nr, tn, tiles_per_chunk, need_mask):
    """Pass 1 (fallback): accumulate f32 column sums directly into the output
    block, which stays VMEM-resident across the 'arbitrary' tile axis."""

    def kernel(x_ref, sum_ref):
        t = pl.program_id(2)

        @pl.when(t == 0)
        def _init():
            sum_ref[...] = jnp.zeros_like(sum_ref)

        x = x_ref[...].astype(jnp.float32)
        if need_mask:
            g = pl.program_id(1) * tiles_per_chunk + t
            valid = nr - g * tn
            rows = jax.lax.broadcasted_iota(jnp.int32, x.shape, 0)
            x = jnp.where(rows < valid, x, 0.0)
        sum_ref[...] += jnp.sum(x, axis=0, keepdims=True)

    return kernel


def _scale_kernel(x_ref, s_ref, o_ref):
    """Pass 2 (fallback): streaming per-channel scale, input dtype."""
    o_ref[...] = (x_ref[...] * s_ref[...]).astype(o_ref.dtype)


# ---------------------------------------------------------------------------
# Sizing helpers
# ---------------------------------------------------------------------------
def _vmem_scoped_limit_bytes():
    """Scoped VMEM limit derived from per-TC capacity (v7x: 64 MiB -> 32 MiB
    scoped; v5e/v6e: 128 MiB -> 64 MiB scoped)."""
    cap = None
    try:
        info = pltpu.get_tpu_info()
        for attr in ("vmem_capacity_bytes", "vmem_bytes", "vmem_size_bytes"):
            v = getattr(info, attr, None)
            if v:
                cap = int(v)
                break
    except Exception:
        cap = None
    if not cap:
        cap = 64 << 20  # conservative default (v7x per-TensorCore)
    return int(min(64 << 20, max(16 << 20, cap // 2)))


def _pick_lane_fold(n, c):
    """k = lcm(C, 128) // C when it divides N, else 1 (masked-store fallback)."""
    k = 128 // math.gcd(c, 128)
    if k > 1 and (n % k) != 0:
        k = 1
    return k


def _pick_row_tile(num_rows, lane_width, itemsize, budget_bytes):
    """Dtype-aware row tile: multiple of the packed-sublane quantum, under the
    byte budget, preferring an exact divisor of num_rows (no masking)."""
    quantum = max(8, 32 // max(1, itemsize))        # 8 f32 / 16 bf16 / 32 int8
    row_bytes = lane_width * itemsize
    if num_rows * row_bytes <= budget_bytes:
        return num_rows                             # full extent: always legal
    cap = max(quantum, (budget_bytes // row_bytes) // quantum * quantum)
    cap = min(cap, max(quantum, (num_rows // quantum) * quantum))
    best = None
    t = quantum
    while t <= cap:
        if num_rows % t == 0:
            best = t
        t += quantum
    return best if best is not None else cap        # cdiv grid + masking


# ---------------------------------------------------------------------------
# Wrapper
# ---------------------------------------------------------------------------
def se_layer(x, w1, w2, *, force_two_pass=False, donate_x=False,
             tile_budget_bytes=4 << 20):
    """x: (B, N, C); w1: (C//r, C); w2: (C, C//r)  (PyTorch Linear layout)."""
    B, N, C = x.shape
    H = w1.shape[0]
    itemsize = x.dtype.itemsize

    # Lane-dense folding: view (N, C) as (N//k, k*C) so the last dim is a
    # multiple of 128 (unmasked vst); free row-major reshape.
    k = _pick_lane_fold(N, C)
    NR, CL = N // k, k * C
    xr = x.reshape(B, NR, CL)

    vmem_limit = _vmem_scoped_limit_bytes()

    # ------------------ Fused single-pass path ------------------------------
    slab_bytes = NR * CL * itemsize
    f32_temp = NR * CL * 4 if itemsize < 4 else 0     # possible f32 reduce temp
    w_bytes = 2 * 2 * (w1.size + w2.size) * 4          # double-buffered weights
    fuse_ok = (not force_two_pass) and (
        4 * slab_bytes + f32_temp + w_bytes + (512 << 10)
        <= int(vmem_limit * 0.85))

    if fuse_ok:
        w1f = w1.astype(jnp.float32)                   # (H, C)
        w2tf = w2.T.astype(jnp.float32)                # (H, C)
        out = pl.pallas_call(
            _make_fused_kernel(k, C, 1.0 / N),
            out_shape=jax.ShapeDtypeStruct((B, NR, CL), x.dtype),
            grid_spec=pltpu.PrefetchScalarGridSpec(
                num_scalar_prefetch=0,
                grid=(B,),
                in_specs=[
                    pl.BlockSpec((None, NR, CL), lambda b: (b, 0, 0)),
                    pl.BlockSpec((H, C), lambda b: (0, 0)),
                    pl.BlockSpec((H, C), lambda b: (0, 0)),
                ],
                out_specs=pl.BlockSpec((None, NR, CL), lambda b: (b, 0, 0)),
            ),
            compiler_params=pltpu.CompilerParams(
                dimension_semantics=("parallel",),
                vmem_limit_bytes=vmem_limit,
            ),
            cost_estimate=pl.CostEstimate(
                flops=2 * B * N * C + 4 * B * H * C,
                transcendentals=B * C,
                bytes_accessed=2 * B * N * C * itemsize + 2 * 4 * H * C,
            ),
            input_output_aliases=({0: 0} if donate_x else {}),
        )(xr, w1f, w2tf)
        return out.reshape(B, N, C)

    # ------------------ Two-pass fallback ------------------------------------
    TN = _pick_row_tile(NR, CL, itemsize, tile_budget_bytes)
    n_tiles = -(-NR // TN)
    need_mask = (NR % TN) != 0

    # Give both v7x TensorCores work in the reduction when B == 1.
    if B == 1 and n_tiles >= 2 and (n_tiles % 2) == 0:
        n_chunks, tiles_per_chunk = 2, n_tiles // 2
    else:
        n_chunks, tiles_per_chunk = 1, n_tiles

    # Pass 1: per-(B, chunk) f32 column sums over the tiled row axis.
    sums = pl.pallas_call(
        _make_rowsum_kernel(NR, TN, tiles_per_chunk, need_mask),
        out_shape=jax.ShapeDtypeStruct((B, n_chunks, 1, CL), jnp.float32),
        grid_spec=pltpu.PrefetchScalarGridSpec(
            num_scalar_prefetch=0,
            grid=(B, n_chunks, tiles_per_chunk),
            in_specs=[pl.BlockSpec(
                (None, TN, CL),
                lambda b, c, t: (b, c * tiles_per_chunk + t, 0))],
            out_specs=pl.BlockSpec((None, None, 1, CL),
                                   lambda b, c, t: (b, c, 0, 0)),
        ),
        compiler_params=pltpu.CompilerParams(
            dimension_semantics=("parallel", "parallel", "arbitrary"),
            vmem_limit_bytes=vmem_limit,
        ),
        cost_estimate=pl.CostEstimate(
            flops=B * N * C,
            transcendentals=0,
            bytes_accessed=B * N * C * itemsize + B * n_chunks * CL * 4,
        ),
    )(xr)

    # Tiny gate MLP in plain JAX (off the streaming critical path).
    total = sums.sum(axis=(1, 2))                                   # (B, CL)
    y = total.reshape(B, k, C).sum(axis=1) / jnp.float32(N)         # (B, C)
    h = jnp.maximum(y @ w1.T.astype(jnp.float32), 0.0)              # (B, H)
    s = jax.nn.sigmoid(h @ w2.T.astype(jnp.float32))                # (B, C)
    s_lanes = jnp.tile(s, (1, k)).astype(x.dtype).reshape(B, 1, CL)

    # Pass 2: streaming scale, fully parallel over (B, tiles).
    out = pl.pallas_call(
        _scale_kernel,
        out_shape=jax.ShapeDtypeStruct((B, NR, CL), x.dtype),
        grid_spec=pltpu.PrefetchScalarGridSpec(
            num_scalar_prefetch=0,
            grid=(B, n_tiles),
            in_specs=[
                pl.BlockSpec((None, TN, CL), lambda b, t: (b, t, 0)),
                pl.BlockSpec((None, 1, CL), lambda b, t: (b, 0, 0)),
            ],
            out_specs=pl.BlockSpec((None, TN, CL), lambda b, t: (b, t, 0)),
        ),
        compiler_params=pltpu.CompilerParams(
            dimension_semantics=("parallel", "parallel"),
            vmem_limit_bytes=vmem_limit,
        ),
        cost_estimate=pl.CostEstimate(
            flops=B * N * C,
            transcendentals=0,
            bytes_accessed=2 * B * N * C * itemsize + B * CL * itemsize,
        ),
        input_output_aliases=({0: 0} if donate_x else {}),
    )(xr, s_lanes)

    return out.reshape(B, N, C)


def se_layer_ref(x, w1, w2):
    """Pure-JAX reference matching the PyTorch module."""
    y = jnp.mean(x, axis=1)                       # (B, C)
    h = jnp.maximum(y @ w1.T, 0.0)                # (B, C//r)
    s = jax.nn.sigmoid(h @ w2.T)                  # (B, C)
    return x * s[:, None, :]


if __name__ == "__main__":
    key = jax.random.PRNGKey(0)

    def make_inputs(b, n, c, r, kk):
        h = max(1, c // r)
        kx, k1, k2 = jax.random.split(kk, 3)
        xx = jax.random.normal(kx, (b, n, c), dtype=jnp.float32)
        b1 = 1.0 / (c ** 0.5)
        b2 = 1.0 / (h ** 0.5)
        ww1 = jax.random.uniform(k1, (h, c), jnp.float32, -b1, b1)
        ww2 = jax.random.uniform(k2, (c, h), jnp.float32, -b2, b2)
        return xx, ww1, ww2

    def check(out, xx, ww1, ww2, name):
        ref = se_layer_ref(xx, ww1, ww2)
        assert out.shape == xx.shape, name
        assert jnp.allclose(out, ref, atol=1e-5, rtol=1e-5), f"mismatch: {name}"

    kA, kB, kC = jax.random.split(key, 3)

    # 1) Fused single-pass path (slab fits VMEM) — primary configuration.
    x, w1, w2 = make_inputs(2, 64, 32, 16, kA)
    out = jax.block_until_ready(se_layer(x, w1, w2))
    check(out, x, w1, w2, "fused")

    # 2) Two-pass fallback with a non-dividing row tile (masked reduction).
    x, w1, w2 = make_inputs(2, 104, 32, 16, kB)
    out = jax.block_until_ready(
        se_layer(x, w1, w2, force_two_pass=True, tile_budget_bytes=8 * 128 * 4))
    check(out, x, w1, w2, "two_pass_masked")

    # 3) Two-pass fallback, B=1: reduction split over 2 parallel chunks.
    x, w1, w2 = make_inputs(1, 256, 32, 16, kC)
    out = jax.block_until_ready(
        se_layer(x, w1, w2, force_two_pass=True, tile_budget_bytes=8 * 128 * 4))
    check(out, x, w1, w2, "two_pass_chunked")

    print("KERNEL_OK")
</pallas_src>

<mosaic_0001>
module attributes {stable_mosaic.version = 11 : i64} {
  func.func @kernel(%arg0: i32, %arg1: memref<1x16x128xf32, #tpu.memory_space<vmem>>, %arg2: memref<2x32xf32, #tpu.memory_space<vmem>>, %arg3: memref<2x32xf32, #tpu.memory_space<vmem>>, %arg4: memref<1x16x128xf32, #tpu.memory_space<vmem>>) attributes {dimension_semantics = [#tpu.dimension_semantics<parallel>], iteration_bounds = array<i64: 2>, scalar_prefetch = 0 : i64, scratch_operands = 0 : i64, tpu.core_type = #tpu.core_type<tc>, window_params = [{transform_indices = @transform_0, window_bounds = array<i64: 1, 16, 128>}, {pipeline_mode = #tpu.pipeline_mode<synchronous>, transform_indices = @transform_1, window_bounds = array<i64: 2, 32>}, {pipeline_mode = #tpu.pipeline_mode<synchronous>, transform_indices = @transform_2, window_bounds = array<i64: 2, 32>}, {transform_indices = @transform_3, window_bounds = array<i64: 1, 16, 128>}]} {
    %c0 = arith.constant 0 : index
    %c0_0 = arith.constant 0 : index
    %c0_1 = arith.constant 0 : index
    %0 = vector.load %arg1[%c0, %c0_0, %c0_1] : memref<1x16x128xf32, #tpu.memory_space<vmem>>, vector<1x16x128xf32>
    %1 = vector.shape_cast %0 : vector<1x16x128xf32> to vector<16x128xf32>
    %cst = arith.constant dense<0.000000e+00> : vector<128xf32>
    %2 = vector.multi_reduction <add>, %1, %cst [0] : vector<16x128xf32> to vector<128xf32>
    %3 = vector.shape_cast %2 : vector<128xf32> to vector<1x128xf32>
    %4 = vector.extract_strided_slice %3 {offsets = [0, 0], sizes = [1, 32], strides = [1, 1]} : vector<1x128xf32> to vector<1x32xf32>
    %5 = vector.extract_strided_slice %3 {offsets = [0, 32], sizes = [1, 32], strides = [1, 1]} : vector<1x128xf32> to vector<1x32xf32>
    %6 = arith.addf %4, %5 : vector<1x32xf32>
    %7 = vector.extract_strided_slice %3 {offsets = [0, 64], sizes = [1, 32], strides = [1, 1]} : vector<1x128xf32> to vector<1x32xf32>
    %8 = arith.addf %6, %7 : vector<1x32xf32>
    %9 = vector.extract_strided_slice %3 {offsets = [0, 96], sizes = [1, 32], strides = [1, 1]} : vector<1x128xf32> to vector<1x32xf32>
    %10 = arith.addf %8, %9 : vector<1x32xf32>
    %cst_2 = arith.constant 1.562500e-02 : f32
    %11 = vector.broadcast %cst_2 : f32 to vector<1x32xf32>
    %12 = arith.mulf %10, %11 : vector<1x32xf32>
    %c0_3 = arith.constant 0 : index
    %c0_4 = arith.constant 0 : index
    %13 = vector.load %arg2[%c0_3, %c0_4] : memref<2x32xf32, #tpu.memory_space<vmem>>, vector<2x32xf32>
    %14 = vector.broadcast %12 : vector<1x32xf32> to vector<2x32xf32>
    %15 = arith.mulf %14, %13 : vector<2x32xf32>
    %cst_5 = arith.constant dense<0.000000e+00> : vector<2xf32>
    %16 = vector.multi_reduction <add>, %15, %cst_5 [1] : vector<2x32xf32> to vector<2xf32>
    %17 = vector.shape_cast %16 : vector<2xf32> to vector<2x1xf32>
    %cst_6 = arith.constant 0.000000e+00 : f32
    %18 = vector.broadcast %cst_6 : f32 to vector<2x1xf32>
    %19 = arith.maximumf %17, %18 : vector<2x1xf32>
    %c0_7 = arith.constant 0 : index
    %c0_8 = arith.constant 0 : index
    %20 = vector.load %arg3[%c0_7, %c0_8] : memref<2x32xf32, #tpu.memory_space<vmem>>, vector<2x32xf32>
    %21 = vector.broadcast %19 : vector<2x1xf32> to vector<2x32xf32>
    %22 = arith.mulf %21, %20 : vector<2x32xf32>
    %cst_9 = arith.constant dense<0.000000e+00> : vector<32xf32>
    %23 = vector.multi_reduction <add>, %22, %cst_9 [0] : vector<2x32xf32> to vector<32xf32>
    %24 = vector.shape_cast %23 : vector<32xf32> to vector<1x32xf32>
    %25 = arith.negf %24 : vector<1x32xf32>
    %26 = math.exp %25 : vector<1x32xf32>
    %cst_10 = arith.constant 1.000000e+00 : f32
    %27 = vector.broadcast %cst_10 : f32 to vector<1x32xf32>
    %28 = arith.addf %27, %26 : vector<1x32xf32>
    %29 = arith.divf %27, %28 : vector<1x32xf32>
    %30 = tpu.concatenate %29, %29, %29, %29 in 1 : vector<1x32xf32>, vector<1x32xf32>, vector<1x32xf32>, vector<1x32xf32> -> vector<1x128xf32>
    %c0_11 = arith.constant 0 : index
    %c0_12 = arith.constant 0 : index
    %c0_13 = arith.constant 0 : index
    %31 = vector.load %arg1[%c0_11, %c0_12, %c0_13] : memref<1x16x128xf32, #tpu.memory_space<vmem>>, vector<1x16x128xf32>
    %32 = vector.shape_cast %31 : vector<1x16x128xf32> to vector<16x128xf32>
    %33 = vector.broadcast %30 : vector<1x128xf32> to vector<16x128xf32>
    %34 = arith.mulf %32, %33 : vector<16x128xf32>
    %c0_14 = arith.constant 0 : index
    %c0_15 = arith.constant 0 : index
    %c0_16 = arith.constant 0 : index
    %35 = vector.load %arg4[%c0_14, %c0_15, %c0_16] : memref<1x16x128xf32, #tpu.memory_space<vmem>>, vector<1x16x128xf32>
    %36 = vector.shape_cast %35 : vector<1x16x128xf32> to vector<16x128xf32>
    %37 = vector.shape_cast %34 : vector<16x128xf32> to vector<1x16x128xf32>
    tpu.vector_store %arg4[%c0_14, %c0_15, %c0_16], %37 {strides = array<i32>} : memref<1x16x128xf32, #tpu.memory_space<vmem>>, vector<1x16x128xf32>,
    return
  }
  func.func @transform_0(%arg0: i32) -> (i32, i32, i32) {
    %c0_i32 = arith.constant 0 : i32
    %c0_i32_0 = arith.constant 0 : i32
    %c0_i32_1 = arith.constant 0 : i32
    return %arg0, %c0_i32, %c0_i32_0 : i32, i32, i32
  }
  func.func @transform_1(%arg0: i32) -> (i32, i32) {
    %c0_i32 = arith.constant 0 : i32
    %c0_i32_0 = arith.constant 0 : i32
    %c0_i32_1 = arith.constant 0 : i32
    return %c0_i32, %c0_i32_0 : i32, i32
  }
  func.func @transform_2(%arg0: i32) -> (i32, i32) {
    %c0_i32 = arith.constant 0 : i32
    %c0_i32_0 = arith.constant 0 : i32
    %c0_i32_1 = arith.constant 0 : i32
    return %c0_i32, %c0_i32_0 : i32, i32
  }
  func.func @transform_3(%arg0: i32) -> (i32, i32, i32) {
    %c0_i32 = arith.constant 0 : i32
    %c0_i32_0 = arith.constant 0 : i32
    %c0_i32_1 = arith.constant 0 : i32
    return %arg0, %c0_i32, %c0_i32_0 : i32, i32, i32
  }
}

</mosaic_0001>

<llo_original>
// kernel: tpu_custom_call.1
$region0: #{tpu_custom_call.1}
  #allocation0 [shape = 'u32[]', space=smem, size = 0x4, offset = 0x4, fixed_abs, tag = 'smem constant byte address 0x4 - core index']
  #allocation1 [shape = 'u32[144,128]{1,0:T(1,128)}', space=vmem, size = 0x12000, scoped, tag = 'internal scratch']
  %s0 = inlined_call_operand.hbm [shape: f32[2,16,128], index: 0, kind: input, shape index: {}]
  %s1 = inlined_call_operand.hbm [shape: f32[2,32], index: 1, kind: input, shape index: {}]
  %s2 = inlined_call_operand.vmem [shape: f32[2,32], index: 2, kind: input, shape index: {}]
  %s3 = inlined_call_operand.hbm [shape: f32[2,16,128], index: 3, kind: output, shape index: {}]
  %s4 = sld [smem:[#allocation0]]
  $region53: #{tpu_custom_call.1} parent=0
    _
  %s6 = ssub.s32 1, %s4
  %s7 = scalar_select 0, %s6, %s4
  $region1: #{tpu_custom_call.1} parent=0
    #allocation2 [shape = 'u8[16384]{0}', space=vmem, size = 0x4000, scoped, tag = 'input window, operand 0']
    #allocation3 [shape = 's32[2]{0}', space=sflag, size = 0x8, scoped, tag = 'scoped memory for tpu_custom_call.1']
    #allocation4 [shape = 's32[2]{0}', space=sflag, size = 0x8, scoped, tag = 'scoped memory for tpu_custom_call.1']
    #allocation5 [shape = 'u8[1024]{0}', space=vmem, size = 0x400, scoped, tag = 'input window, operand 1, single buffered']
    #allocation6 [shape = 's32[1]{0}', space=sflag, size = 0x4, scoped, tag = 'scoped memory for tpu_custom_call.1']
    #allocation7 [shape = 'u8[16384]{0}', space=vmem, size = 0x4000, scoped, tag = 'output window, operand 0']
    %8 = vsyncpa [#allocation3], 0
    %s9 = scalar_lea.sflag [#allocation3], 1
    %10 = vsyncpa %s9, 0
    %11 = vsyncpa [#allocation6], 0
    %12 = vsyncpa [#allocation4], 0
    %s13 = scalar_lea.sflag [#allocation4], 1
    %14 = vsyncpa %s13, 0
    loop: start=0, step=1, limit=4
    $region2: #{tpu_custom_call.1} parent=1 // loop_pre_header
      _
    $region3: #{tpu_custom_call.1} parent=1 // loop_header
      %s16 = sphi 0, %s20
      %p17 = scmp.ge.s32.totalorder %s16, 4
      %s26 = sphi 0, %s28
      %s29 = sphi 0, %s26
      %s30 = sphi 0, %s29
      %s46 = sphi 0, %s30
      %s50 = sphi 0, %s50
      %s52 = sphi 0, %s50
      %s53 = sphi 0, %s52
      %s67 = sphi 0, %s53
      %s71 = sphi 0, %s71
      %s73 = sphi 0, %s71
      %s74 = sphi 0, %s73
      %s88 = sphi 0, %s74
      %s94 = sphi 0, %s96
      %s97 = sphi 0, %s94
      %s98 = sphi 0, %s97
      %s114 = sphi 0, %s98
    $region4: #{tpu_custom_call.1} parent=1 // loop_header_branch
      %19 = sbr.rel (%p17) target = $region8
    $region5: #{tpu_custom_call.1} parent=1 // loop_body
      %s21 = ssub.s32 %s16, 1
      %s22 = ssub.s32 %s16, 2
      %s23 = sadd.s32 %s16, 1
      %s24 = ssub.s32 %s16, %s23
      %p25 = scmp.eq.s32.totalorder %s24, 0
      %s27 = sadd.s32 %s26, 1
      %s28 = scalar_select %p25, %s26, %s27
      %p31 = pneg %p25
      %p32 = scmp.eq.s32.totalorder %s16, 1
      %p33 = por %p31, %p32
      %p34 = scmp.ne.s32.totalorder %s26, %s29
      %p35 = scmp.eq.s32.totalorder %s16, 0
      %p36 = por %p34, %p35
      %p37 = scmp.ne.s32.totalorder %s26, %s29
      %p38 = scmp.eq.s32.totalorder %s21, 1
      %p39 = por %p37, %p38
      %p40 = scmp.ne.s32.totalorder %s29, %s30
      %p41 = scmp.eq.s32.totalorder %s21, 0
      %p42 = por %p40, %p41
      %p43 = scmp.ne.s32.totalorder %s29, %s30
      %p44 = scmp.eq.s32.totalorder %s22, 1
      %p45 = por %p43, %p44
      %p47 = scmp.ne.s32.totalorder %s30, %s46
      %p48 = scmp.eq.s32.totalorder %s22, 0
      %p49 = por %p47, %p48
      %s51 = sadd.s32 %s50, 1
      %p54 = scmp.eq.s32.totalorder %s16, 1
      %p55 = scmp.ne.s32.totalorder %s50, %s52
      %p56 = scmp.eq.s32.totalorder %s16, 0
      %p57 = por %p55, %p56
      %p58 = scmp.ne.s32.totalorder %s50, %s52
      %p59 = scmp.eq.s32.totalorder %s21, 1
      %p60 = por %p58, %p59
      %p61 = scmp.ne.s32.totalorder %s52, %s53
      %p62 = scmp.eq.s32.totalorder %s21, 0
      %p63 = por %p61, %p62
      %p64 = scmp.ne.s32.totalorder %s52, %s53
      %p65 = scmp.eq.s32.totalorder %s22, 1
      %p66 = por %p64, %p65
      %p68 = scmp.ne.s32.totalorder %s53, %s67
      %p69 = scmp.eq.s32.totalorder %s22, 0
      %p70 = por %p68, %p69
      %s72 = sadd.s32 %s71, 1
      %p75 = scmp.eq.s32.totalorder %s16, 1
      %p76 = scmp.ne.s32.totalorder %s71, %s73
      %p77 = scmp.eq.s32.totalorder %s16, 0
      %p78 = por %p76, %p77
      %p79 = scmp.ne.s32.totalorder %s71, %s73
      %p80 = scmp.eq.s32.totalorder %s21, 1
      %p81 = por %p79, %p80
      %p82 = scmp.ne.s32.totalorder %s73, %s74
      %p83 = scmp.eq.s32.totalorder %s21, 0
      %p84 = por %p82, %p83
      %p85 = scmp.ne.s32.totalorder %s73, %s74
      %p86 = scmp.eq.s32.totalorder %s22, 1
      %p87 = por %p85, %p86
      %p89 = scmp.ne.s32.totalorder %s74, %s88
      %p90 = scmp.eq.s32.totalorder %s22, 0
      %p91 = por %p89, %p90
      %s92 = ssub.s32 %s16, %s23
      %p93 = scmp.eq.s32.totalorder %s92, 0
      %s95 = sadd.s32 %s94, 1
      %s96 = scalar_select %p93, %s94, %s95
      %p99 = pneg %p93
      %p100 = scmp.eq.s32.totalorder %s16, 1
      %p101 = por %p99, %p100
      %p102 = scmp.ne.s32.totalorder %s94, %s97
      %p103 = scmp.eq.s32.totalorder %s16, 0
      %p104 = por %p102, %p103
      %p105 = scmp.ne.s32.totalorder %s94, %s97
      %p106 = scmp.eq.s32.totalorder %s21, 1
      %p107 = por %p105, %p106
      %p108 = scmp.ne.s32.totalorder %s97, %s98
      %p109 = scmp.eq.s32.totalorder %s21, 0
      %p110 = por %p108, %p109
      %p111 = scmp.ne.s32.totalorder %s97, %s98
      %p112 = scmp.eq.s32.totalorder %s22, 1
      %p113 = por %p111, %p112
      %p115 = scmp.ne.s32.totalorder %s98, %s114
      %p116 = scmp.eq.s32.totalorder %s22, 0
      %p117 = por %p115, %p116
      %p118 = scmp.le.s32.totalorder 1, %s16
      %p119 = scmp.lt.s32.totalorder %s16, 3
      %p120 = pnand %p118, %p119
      %p121 = pneg %p120
      // Predicated region
      $region9: #{tpu_custom_call.1} parent=5 // pred_check
        _
      $region10: #{tpu_custom_call.1} parent=5 // pred_check_branch
        %123 = sbr.rel (%p120) target = $region12
      $region11: #{tpu_custom_call.1} parent=5 // pred_region
        %s124 = ssub.s32 %s16, 1
        // Predicated region
        $region13: #{tpu_custom_call.1} parent=11 // pred_check
          %p125 = pneg %p63
        $region14: #{tpu_custom_call.1} parent=11 // pred_check_branch
          %127 = sbr.rel (%p125) target = $region16
        $region15: #{tpu_custom_call.1} parent=11 // pred_region
          %s129 = ssub.s32 32, 32
          %130 = vsyncadd [#allocation6], %s129
          %s132 = sshll.u32 [#allocation5], 4
          %s133 = int_to_ptr.vmem [resolvable:$true] %s132
          %135 = dma.hbm_to_vmem [thread:$0]  %s1, 32, %s133, [#allocation6]
        $region16: #{tpu_custom_call.1} parent=11 // pred_fallthru
          _
        // Predicated region
        $region17: #{tpu_custom_call.1} parent=11 // pred_check
          %p136 = pneg %p84
        $region18: #{tpu_custom_call.1} parent=11 // pred_check_branch
          %138 = sbr.rel (%p136) target = $region20
        $region19: #{tpu_custom_call.1} parent=11 // pred_region
          _
        $region20: #{tpu_custom_call.1} parent=11 // pred_fallthru
          _
      $region12: #{tpu_custom_call.1} parent=5 // pred_fallthru
        _
      %p139 = scmp.lt.s32.totalorder %s16, 2
      // Predicated region
      $region21: #{tpu_custom_call.1} parent=5 // pred_check
        %p140 = pneg %p139
      $region22: #{tpu_custom_call.1} parent=5 // pred_check_branch
        %142 = sbr.rel (%p140) target = $region24
      $region23: #{tpu_custom_call.1} parent=5 // pred_region
        // Predicated region
        $region25: #{tpu_custom_call.1} parent=23 // pred_check
          %p143 = pneg %p36
        $region26: #{tpu_custom_call.1} parent=23 // pred_check_branch
          %145 = sbr.rel (%p143) target = $region28
        $region27: #{tpu_custom_call.1} parent=23 // pred_region
          %s146 = sand.u32 %s26, 1
          %s147 = scalar_lea.sflag [#allocation3], %s146
          %s148 = sand.u32 %s26, 1
          %s149 = smul.addr %s148, 16
          %s150 = scalar_lea.vmem [#allocation2], %s149
          %s152 = ssub.s32 256, 256
          %153 = vsyncadd %s147, %s152
          %s154 = smul.addr %s16, 2
          %s155 = smul.addr %s154, 128
          %s156 = scalar_lea.hbm %s0, %s155
          %s157 = sshll.u32 %s150, 4
          %s158 = int_to_ptr.vmem [resolvable:$true] %s157
          %163 = dma.hbm_to_vmem [thread:$0]  %s156, 256, %s158, %s147, 128, 128, 8
        $region28: #{tpu_custom_call.1} parent=23 // pred_fallthru
          _
      $region24: #{tpu_custom_call.1} parent=5 // pred_fallthru
        _
      %p164 = scmp.le.s32.totalorder 1, %s16
      %p165 = scmp.lt.s32.totalorder %s16, 3
      %p166 = pnand %p164, %p165
      %p167 = pneg %p166
      // Predicated region
      $region29: #{tpu_custom_call.1} parent=5 // pred_check
        _
      $region30: #{tpu_custom_call.1} parent=5 // pred_check_branch
        %169 = sbr.rel (%p166) target = $region32
      $region31: #{tpu_custom_call.1} parent=5 // pred_region
        %s170 = ssub.s32 %s16, 1
        %s171 = sand.u32 %s29, 1
        %s172 = scalar_lea.sflag [#allocation3], %s171
        %s173 = sand.u32 %s29, 1
        %s174 = smul.addr %s173, 16
        %s175 = scalar_lea.vmem [#allocation2], %s174
        // Predicated region
        $region33: #{tpu_custom_call.1} parent=31 // pred_check
          %p176 = pneg %p42
        $region34: #{tpu_custom_call.1} parent=31 // pred_check_branch
          %178 = sbr.rel (%p176) target = $region36
        $region35: #{tpu_custom_call.1} parent=31 // pred_region
          %179 = dma.done %s172, 256
        $region36: #{tpu_custom_call.1} parent=31 // pred_fallthru
          _
        // Predicated region
        $region37: #{tpu_custom_call.1} parent=31 // pred_check
          %p180 = pneg %p63
        $region38: #{tpu_custom_call.1} parent=31 // pred_check_branch
          %182 = sbr.rel (%p180) target = $region40
        $region39: #{tpu_custom_call.1} parent=31 // pred_region
          %183 = dma.done [#allocation6], 32
        $region40: #{tpu_custom_call.1} parent=31 // pred_fallthru
          _
        %s184 = sand.u32 %s29, 1
        %s185 = scalar_lea.sflag [#allocation3], %s184
        %s186 = sand.u32 %s29, 1
        %s187 = smul.addr %s186, 16
        %s188 = scalar_lea.vmem [#allocation2], %s187
        %p189 = pneg %p42
        %p190 = pneg %p39
        %p191 = pneg %p63
        %p192 = pneg %p60
        %p193 = pneg %p84
        %p194 = pneg %p81
        %p195 = pneg %p110
        %p196 = pneg %p107
        %s197 = sand.u32 %s97, 1
        %s198 = scalar_lea.sflag [#allocation4], %s197
        %s199 = sand.u32 %s97, 1
        %s200 = smul.addr %s199, 16
        %s201 = scalar_lea.vmem [#allocation7], %s200
        %v202 = vld [vmem:[%s175] sm:$0xff]
        %v203 = vld [vmem:[%s175 + $0x8] sm:$0xff]
        %v204 = vadd.f32 %v202, %v203
        %v205 = vrot.slane %v204, 4
        %v206 = vadd.f32 %v204, %v205
        %v207 = vrot.slane %v206, 2
        %v208 = vadd.f32 %v206, %v207
        %v209 = vrot.slane %v208, 1
        %v210 = vadd.f32 %v208, %v209
        %212 = vrot.lane.b32.xlu0 %v210, 96
        %v213 = vpop.permute.xlu0 %212
        %v215 = vadd.f32 %v210, %v213
        %216 = vrot.lane.b32.xlu0 %v210, 64
        %v217 = vpop.permute.xlu0 %216
        %v219 = vadd.f32 %v215, %v217
        %220 = vrot.lane.b32.xlu0 %v210, 32
        %v221 = vpop.permute.xlu0 %220
        %v223 = vadd.f32 %v219, %v221
        %v224 = vmul.f32 %v223, 0.015625
        %v225 = vld [vmem:[#allocation5] sm:$0x3]
        %v226 = vlaneseq
        %v227 = vshrl.u32 %v226, 7
        %v228 = vsub.s32 0, %v227
        %v229 = vrot.slane %v224, %v228
        %v230 = vmul.f32 %v229, %v225
        %vm231 = vcmask 254976
        %v232 = vsel %vm231, %v230, 0.0
        %233 = vadd.xlane.f32.xlu0 %v232
        %v234 = vpop.xlane.xlu0 %233
        %v235 = vmax.f32 %v234, 0.0
        %v236 = vld [vmem:[%s2] sm:$0x3]
        %v237 = vmul.f32 %v235, %v236
        %v238 = vsel %vm231, %v237, 0.0
        %v239 = vrot.slane %v238, 4
        %v240 = vadd.f32 %v238, %v239
        %v241 = vrot.slane %v240, 2
        %v242 = vadd.f32 %v240, %v241
        %v243 = vrot.slane %v242, 1
        %v244 = vadd.f32 %v242, %v243
        %v245 = vxor.u32 %v244, 2147483648
        %v246 = vmul.f32 %v245, 1.442695
        %v247 = vpow.pop %v246
        %v248 = vadd.f32 %v247, 1.0
        %v249 = vrcp.pop %v248
        %v250 = vmul.f32 1.0, %v249
        %252 = vrot.lane.b32.xlu0 %v250, 32
        %v253 = vpop.permute.xlu0 %252
        %255 = vrot.lane.b32.xlu0 %v250, 64
        %v256 = vpop.permute.xlu0 %255
        %258 = vrot.lane.b32.xlu0 %v250, 96
        %v259 = vpop.permute.xlu0 %258
        %vm261 = vcmask 261120
        %v262 = vsel %vm261, %v250, %v253
        %vm263 = vcmask 523264
        %v264 = vsel %vm263, %v262, %v256
        %vm265 = vcmask 785408
        %v266 = vsel %vm265, %v264, %v259
        %v267 = vlaneseq
        %v268 = vshrl.u32 %v267, 7
        %v269 = vsub.s32 0, %v268
        %v270 = vrot.slane %v266, %v269
        %v271 = vmul.f32 %v202, %v270
        %v272 = vmul.f32 %v203, %v270
        %273 = vst [vmem:[%s201] sm:$0xff] %v271
        %274 = vst [vmem:[%s201 + $0x8] sm:$0xff] %v272
        %s275 = sand.u32 %s97, 1
        %s276 = scalar_lea.sflag [#allocation4], %s275
        %s277 = sand.u32 %s97, 1
        %s278 = smul.addr %s277, 16
        %s279 = scalar_lea.vmem [#allocation7], %s278
        // Predicated region
        $region41: #{tpu_custom_call.1} parent=31 // pred_check
          %p280 = pneg %p107
        $region42: #{tpu_custom_call.1} parent=31 // pred_check_branch
          %282 = sbr.rel (%p280) target = $region44
        $region43: #{tpu_custom_call.1} parent=31 // pred_region
          %s284 = ssub.s32 256, 256
          %285 = vsyncadd %s276, %s284
          %s286 = smul.addr %s21, 2
          %s287 = smul.addr %s286, 128
          %s288 = scalar_lea.hbm %s3, %s287
          %s289 = sshll.u32 %s279, 4
          %s290 = int_to_ptr.vmem [resolvable:$true] %s289
          %295 = dma.vmem_to_hbm [thread:$0]  %s290, 256, %s288, %s276, 128, 128, 8
        $region44: #{tpu_custom_call.1} parent=31 // pred_fallthru
          _
      $region32: #{tpu_custom_call.1} parent=5 // pred_fallthru
        _
      %p296 = scmp.le.s32.totalorder 2, %s16
      // Predicated region
      $region45: #{tpu_custom_call.1} parent=5 // pred_check
        %p297 = pneg %p296
      $region46: #{tpu_custom_call.1} parent=5 // pred_check_branch
        %299 = sbr.rel (%p297) target = $region48
      $region47: #{tpu_custom_call.1} parent=5 // pred_region
        %s300 = ssub.s32 %s16, 2
        // Predicated region
        $region49: #{tpu_custom_call.1} parent=47 // pred_check
          %p301 = pneg %p113
        $region50: #{tpu_custom_call.1} parent=47 // pred_check_branch
          %303 = sbr.rel (%p301) target = $region52
        $region51: #{tpu_custom_call.1} parent=47 // pred_region
          %s304 = sand.u32 %s98, 1
          %s305 = scalar_lea.sflag [#allocation4], %s304
          %s306 = sand.u32 %s98, 1
          %s307 = smul.addr %s306, 16
          %s308 = scalar_lea.vmem [#allocation7], %s307
          %309 = dma.done %s305, 256
        $region52: #{tpu_custom_call.1} parent=47 // pred_fallthru
          _
      $region48: #{tpu_custom_call.1} parent=5 // pred_fallthru
        _
    $region6: #{tpu_custom_call.1} parent=1 // loop_footer
      %s20 = sadd.s32 1, %s16
    $region7: #{tpu_custom_call.1} parent=1 // loop_footer_branch
      %15 = sbr.rel target = $region3
    $region8: #{tpu_custom_call.1} parent=1 // loop_exit
      _
    %310 = vsyncpa [#allocation3], 1
    %s311 = scalar_lea.sflag [#allocation3], 1
    %312 = vsyncpa %s311, 1
    %313 = vsyncpa [#allocation6], 1
    %314 = vsyncpa [#allocation4], 1
    %s315 = scalar_lea.sflag [#allocation4], 1
    %316 = vsyncpa %s315, 1

</llo_original>
